<compile_context>
chip_gen: v7x
topology: tpu7x:2x2x1
jax: 0.10.0
libtpu: 0.0.40
codegen_flags: <defaults>
</compile_context>

<pallas_src>
import functools

import jax
import jax.numpy as jnp
from jax import lax
from jax.experimental import pallas as pl
from jax.experimental.pallas import tpu as pltpu

LN_EPS = 1e-5  # PyTorch nn.LayerNorm default


def _round_up(n, m):
    return pl.cdiv(n, m) * m


def unembed_kernel(x_ref, ln_ref, w_ref, probs_ref,
                   hn_ref, m_ref, l_ref, logits_ref, *, v_actual, ln_eps):
    """One (batch tile i, vocab tile j) grid step.

    x_ref      : (TB, E)      f32   activations (resident across vocab steps)
    ln_ref     : (2, E)       f32   packed LayerNorm params [gamma; beta]
    w_ref      : (E, TV)      bf16  streamed unembedding weight tile
    probs_ref  : (TB, V_pad)  f32   output block (written once, at last j)
    hn_ref     : (TB, E)      bf16  scratch: LayerNorm-ed activations
    m_ref      : (TB, 1)      f32   scratch: running max of logits
    l_ref      : (TB, 1)      f32   scratch: running sum of exp(logits - m)
    logits_ref : (TB, V_pad)  f32   scratch: staged raw logits for this batch tile
    """
    j = pl.program_id(1)
    n_vocab_tiles = pl.num_programs(1)
    tv = w_ref.shape[1]

    # ---- per-batch-tile init (vocab step 0): LayerNorm + softmax state ------
    @pl.when(j == 0)
    def _init():
        x = x_ref[...]                                            # (TB, E) f32
        mu = jnp.mean(x, axis=-1, keepdims=True)
        var = jnp.mean((x - mu) * (x - mu), axis=-1, keepdims=True)
        gamma = ln_ref[0:1, :]                                    # (1, E)
        beta = ln_ref[1:2, :]                                     # (1, E)
        hn = (x - mu) * lax.rsqrt(var + ln_eps) * gamma + beta
        hn_ref[...] = hn.astype(hn_ref.dtype)                     # cast once
        m_ref[...] = jnp.full_like(m_ref, -jnp.inf)
        l_ref[...] = jnp.zeros_like(l_ref)

    # ---- logits for this vocab tile: bf16 MXU inputs, f32 accumulation ------
    logits = jnp.dot(hn_ref[...], w_ref[...],
                     preferred_element_type=jnp.float32)          # (TB, TV)

    # ---- mask padded vocab lanes (only emitted if padding exists) -----------
    if v_actual % tv != 0:
        lanes = j * tv + lax.broadcasted_iota(jnp.int32, (1, tv), 1)
        logits = jnp.where(lanes < v_actual, logits, -jnp.inf)

    # ---- online softmax statistics -------------------------------------------
    m_prev = m_ref[...]
    m_new = jnp.maximum(m_prev, jnp.max(logits, axis=-1, keepdims=True))
    l_ref[...] = (l_ref[...] * jnp.exp(m_prev - m_new)
                  + jnp.sum(jnp.exp(logits - m_new), axis=-1, keepdims=True))
    m_ref[...] = m_new

    # ---- stage raw logits: lane-aligned O(TV) sliced store -------------------
    off = pl.multiple_of(j * tv, tv)                              # tv % 128 == 0
    logits_ref[:, pl.ds(off, tv)] = logits

    # ---- finalize (last vocab step): one exp pass, exact normalization ------
    @pl.when(j == n_vocab_tiles - 1)
    def _finalize():
        row = logits_ref[...]                                     # (TB, V_pad)
        probs = jnp.exp(row - m_ref[...]) / l_ref[...]            # exact 1/l
        probs_ref[...] = probs.astype(probs_ref.dtype)            # padded lanes -> 0


def unembedding_forward(x, gamma, beta, w_unemb_t, *, tb=None, tv=None,
                        eps=LN_EPS, weight_dtype=jnp.bfloat16,
                        out_dtype=jnp.float32, vmem_limit_bytes=None):
    """x: (B, E) f32.  w_unemb_t: (E, V) = PyTorch unembedding.weight.T."""
    B, E = x.shape
    E_w, V = w_unemb_t.shape
    assert E_w == E

    # Tile defaults (performance review):
    #   tb: whole batch (up to 256) -> weight streamed from HBM once per batch
    #       tile and good MXU row utilization.  On v7x (64 MiB VMEM) cap tb so
    #       2 * tb * V_pad * 4 bytes (logits scratch + output block) still fits;
    #       pass vmem_limit_bytes explicitly when pushing large tiles.
    #   tv: large vocab tile (multiple of 128; up to 1024) so per-step weight
    #       DMAs amortize the ~0.35 us grid-step overhead.
    if tv is None:
        tv = min(_round_up(V, 128), 1024)
    if tb is None:
        tb = min(_round_up(B, 8), 256)

    V_pad = _round_up(V, tv)
    B_pad = _round_up(B, tb)

    x_p = x if B_pad == B else jnp.pad(x, ((0, B_pad - B), (0, 0)))
    w = w_unemb_t.astype(weight_dtype)          # halve the dominant HBM traffic
    # TODO(synk): on v7x, weight_dtype=float8_e4m3fn halves weight streaming again.
    w_p = w if V_pad == V else jnp.pad(w, ((0, 0), (0, V_pad - V)))
    ln_params = jnp.stack([gamma, beta]).astype(jnp.float32)      # (2, E): 1 DMA

    grid = (B_pad // tb, V_pad // tv)
    kernel = functools.partial(unembed_kernel, v_actual=V, ln_eps=eps)

    probs_pad = pl.pallas_call(
        kernel,
        out_shape=jax.ShapeDtypeStruct((B_pad, V_pad), out_dtype),
        grid_spec=pltpu.PrefetchScalarGridSpec(
            num_scalar_prefetch=0,
            grid=grid,
            in_specs=[
                pl.BlockSpec((tb, E), lambda i, j: (i, 0)),   # activations (resident over j)
                pl.BlockSpec((2, E), lambda i, j: (0, 0)),    # packed LN gamma/beta
                # Streamed weight tile; on v5e consider pipeline_mode=pl.Buffered(3).
                pl.BlockSpec((E, tv), lambda i, j: (0, j)),
            ],
            # Same block index for every j => output block stays resident across
            # the vocab axis; it is written exactly once, in the final step.
            out_specs=pl.BlockSpec((tb, V_pad), lambda i, j: (i, 0)),
            scratch_shapes=[
                pltpu.VMEM((tb, E), jnp.bfloat16),            # hn (post-LayerNorm, bf16)
                pltpu.VMEM((tb, 1), jnp.float32),             # running max m
                pltpu.VMEM((tb, 1), jnp.float32),             # running sum l
                pltpu.VMEM((tb, V_pad), jnp.float32),         # staged raw logits
            ],
        ),
        compiler_params=pltpu.CompilerParams(
            dimension_semantics=("parallel", "arbitrary"),
            vmem_limit_bytes=vmem_limit_bytes,
        ),
    )(x_p, ln_params, w_p)

    return probs_pad[:B, :V]


def reference_forward(x, gamma, beta, w_unemb_t):
    mu = jnp.mean(x, axis=-1, keepdims=True)
    var = jnp.mean((x - mu) ** 2, axis=-1, keepdims=True)
    hn = (x - mu) / jnp.sqrt(var + LN_EPS) * gamma + beta
    logits = hn @ w_unemb_t
    return jax.nn.softmax(logits, axis=-1)


if __name__ == "__main__":
    key = jax.random.PRNGKey(0)
    k_x, k_b, k_w = jax.random.split(key, 3)

    B = 16
    N_EMBD = 64
    N_VOCAB = 500   # deliberately NOT a multiple of 128: exercises vocab padding + masking

    # Input "Embedding" activations (output of the RWKV blocks).
    x = jax.random.normal(k_x, (B, N_EMBD), jnp.float32)

    # Parameters (shapes match the nn.Module):
    #   normalize_unemb: LayerNorm(N_EMBD) gamma/beta
    #   unembedding.weight: (N_VOCAB, N_EMBD) -> stored transposed (N_EMBD, N_VOCAB)
    gamma = jnp.ones((N_EMBD,), jnp.float32)
    beta = jax.random.normal(k_b, (N_EMBD,), jnp.float32) * 0.02
    w_unemb_t = (jax.random.normal(k_w, (N_EMBD, N_VOCAB), jnp.float32)
                 * (1.0 / jnp.sqrt(N_EMBD)))

    ref = reference_forward(x, gamma, beta, w_unemb_t)

    # 1) Multi-tile path: online softmax across 4 vocab tiles, 2 batch tiles,
    #    last vocab tile partially padded/masked.
    probs_tiled = jax.block_until_ready(
        unembedding_forward(x, gamma, beta, w_unemb_t, tb=8, tv=128))

    # 2) Default (performance-oriented) tiling: tb = B, tv = padded V.
    probs_default = jax.block_until_ready(
        unembedding_forward(x, gamma, beta, w_unemb_t))

    for probs in (probs_tiled, probs_default):
        assert probs.shape == (B, N_VOCAB)
        assert bool(jnp.all(jnp.isfinite(probs)))
        assert bool(jnp.all(probs >= 0.0))
        # Exact normalization (no approx reciprocal): rows sum to 1 tightly.
        assert jnp.allclose(jnp.sum(probs, axis=-1), 1.0, atol=1e-4)
        # bf16 weight/activation streaming vs. f32 reference.
        assert jnp.allclose(probs, ref, atol=2e-3, rtol=5e-2)

    print("KERNEL_OK")
</pallas_src>

<mosaic_0001>
module attributes {stable_mosaic.version = 11 : i64} {
  func.func @unembed_kernel(%arg0: i32, %arg1: i32, %arg2: memref<8x64xf32, #tpu.memory_space<vmem>>, %arg3: memref<2x64xf32, #tpu.memory_space<vmem>>, %arg4: memref<64x128xbf16, #tpu.memory_space<vmem>>, %arg5: memref<8x512xf32, #tpu.memory_space<vmem>>, %arg6: memref<8x64xbf16, #tpu.memory_space<vmem>>, %arg7: memref<8x1xf32, #tpu.memory_space<vmem>>, %arg8: memref<8x1xf32, #tpu.memory_space<vmem>>, %arg9: memref<8x512xf32, #tpu.memory_space<vmem>>) attributes {dimension_semantics = [#tpu.dimension_semantics<parallel>, #tpu.dimension_semantics<arbitrary>], iteration_bounds = array<i64: 2, 4>, scalar_prefetch = 0 : i64, scratch_operands = 4 : i64, tpu.core_type = #tpu.core_type<tc>, window_params = [{transform_indices = @transform_0, window_bounds = array<i64: 8, 64>}, {pipeline_mode = #tpu.pipeline_mode<synchronous>, transform_indices = @transform_1, window_bounds = array<i64: 2, 64>}, {transform_indices = @transform_2, window_bounds = array<i64: 64, 128>}, {transform_indices = @transform_3, window_bounds = array<i64: 8, 512>}]} {
    %c0_i32 = arith.constant 0 : i32
    %0 = arith.cmpi eq, %arg1, %c0_i32 : i32
    %1 = arith.extui %0 : i1 to i32
    %c0_i32_0 = arith.constant 0 : i32
    %2 = arith.cmpi ne, %1, %c0_i32_0 : i32
    scf.if %2 {
      %c0_18 = arith.constant 0 : index
      %c0_19 = arith.constant 0 : index
      %39 = vector.load %arg2[%c0_18, %c0_19] : memref<8x64xf32, #tpu.memory_space<vmem>>, vector<8x64xf32>
      %cst_20 = arith.constant dense<0.000000e+00> : vector<8xf32>
      %40 = vector.multi_reduction <add>, %39, %cst_20 [1] : vector<8x64xf32> to vector<8xf32>
      %41 = vector.shape_cast %40 : vector<8xf32> to vector<8x1xf32>
      %cst_21 = arith.constant 6.400000e+01 : f32
      %42 = vector.broadcast %cst_21 : f32 to vector<8x1xf32>
      %43 = arith.divf %41, %42 : vector<8x1xf32>
      %44 = vector.broadcast %43 : vector<8x1xf32> to vector<8x64xf32>
      %45 = arith.subf %39, %44 : vector<8x64xf32>
      %46 = vector.broadcast %43 : vector<8x1xf32> to vector<8x64xf32>
      %47 = arith.subf %39, %46 : vector<8x64xf32>
      %48 = arith.mulf %45, %47 : vector<8x64xf32>
      %cst_22 = arith.constant dense<0.000000e+00> : vector<8xf32>
      %49 = vector.multi_reduction <add>, %48, %cst_22 [1] : vector<8x64xf32> to vector<8xf32>
      %50 = vector.shape_cast %49 : vector<8xf32> to vector<8x1xf32>
      %cst_23 = arith.constant 6.400000e+01 : f32
      %51 = vector.broadcast %cst_23 : f32 to vector<8x1xf32>
      %52 = arith.divf %50, %51 : vector<8x1xf32>
      %c0_24 = arith.constant 0 : index
      %c0_25 = arith.constant 0 : index
      %53 = vector.load %arg3[%c0_24, %c0_25] : memref<2x64xf32, #tpu.memory_space<vmem>>, vector<1x64xf32>
      %c1 = arith.constant 1 : index
      %c0_26 = arith.constant 0 : index
      %54 = vector.load %arg3[%c1, %c0_26] : memref<2x64xf32, #tpu.memory_space<vmem>>, vector<1x64xf32>
      %55 = vector.broadcast %43 : vector<8x1xf32> to vector<8x64xf32>
      %56 = arith.subf %39, %55 : vector<8x64xf32>
      %cst_27 = arith.constant 9.99999974E-6 : f32
      %57 = vector.broadcast %cst_27 : f32 to vector<8x1xf32>
      %58 = arith.addf %52, %57 : vector<8x1xf32>
      %59 = math.rsqrt %58 : vector<8x1xf32>
      %60 = vector.broadcast %59 : vector<8x1xf32> to vector<8x64xf32>
      %61 = arith.mulf %56, %60 : vector<8x64xf32>
      %62 = vector.broadcast %53 : vector<1x64xf32> to vector<8x64xf32>
      %63 = arith.mulf %61, %62 : vector<8x64xf32>
      %64 = vector.broadcast %54 : vector<1x64xf32> to vector<8x64xf32>
      %65 = arith.addf %63, %64 : vector<8x64xf32>
      %66 = arith.truncf %65 : vector<8x64xf32> to vector<8x64xbf16>
      %c0_28 = arith.constant 0 : index
      %c0_29 = arith.constant 0 : index
      %67 = vector.load %arg6[%c0_28, %c0_29] : memref<8x64xbf16, #tpu.memory_space<vmem>>, vector<8x64xbf16>
      tpu.vector_store %arg6[%c0_28, %c0_29], %66 {strides = array<i32>} : memref<8x64xbf16, #tpu.memory_space<vmem>>, vector<8x64xbf16>,
      %cst_30 = arith.constant 0xFF800000 : f32
      %68 = vector.broadcast %cst_30 : f32 to vector<8x1xf32>
      %c0_31 = arith.constant 0 : index
      %c0_32 = arith.constant 0 : index
      %69 = vector.load %arg7[%c0_31, %c0_32] : memref<8x1xf32, #tpu.memory_space<vmem>>, vector<8x1xf32>
      tpu.vector_store %arg7[%c0_31, %c0_32], %68 {strides = array<i32>} : memref<8x1xf32, #tpu.memory_space<vmem>>, vector<8x1xf32>,
      %cst_33 = arith.constant 0.000000e+00 : f32
      %70 = vector.broadcast %cst_33 : f32 to vector<8x1xf32>
      %c0_34 = arith.constant 0 : index
      %c0_35 = arith.constant 0 : index
      %71 = vector.load %arg8[%c0_34, %c0_35] : memref<8x1xf32, #tpu.memory_space<vmem>>, vector<8x1xf32>
      tpu.vector_store %arg8[%c0_34, %c0_35], %70 {strides = array<i32>} : memref<8x1xf32, #tpu.memory_space<vmem>>, vector<8x1xf32>,
    } else {
    }
    %c0 = arith.constant 0 : index
    %c0_1 = arith.constant 0 : index
    %3 = vector.load %arg6[%c0, %c0_1] : memref<8x64xbf16, #tpu.memory_space<vmem>>, vector<8x64xbf16>
    %c0_2 = arith.constant 0 : index
    %c0_3 = arith.constant 0 : index
    %4 = vector.load %arg4[%c0_2, %c0_3] : memref<64x128xbf16, #tpu.memory_space<vmem>>, vector<64x128xbf16>
    %cst = arith.constant dense<0.000000e+00> : vector<8x128xf32>
    %5 = tpu.matmul %3, %4, %cst {dimension_numbers = #tpu.dot_dimension_numbers<[1], [0], [0], [1], [0, 0, 1, 1], [], []>} : vector<8x64xbf16>, vector<64x128xbf16>, vector<8x128xf32> -> vector<8x128xf32>
    %c128_i32 = arith.constant 128 : i32
    %6 = arith.muli %arg1, %c128_i32 : i32
    %7 = tpu.iota {dimensions = array<i32: 1>} : vector<1x128xi32>
    %8 = vector.broadcast %6 : i32 to vector<1x128xi32>
    %9 = arith.addi %8, %7 : vector<1x128xi32>
    %c500_i32 = arith.constant 500 : i32
    %10 = vector.broadcast %c500_i32 : i32 to vector<1x128xi32>
    %11 = arith.cmpi slt, %9, %10 : vector<1x128xi32>
    %cst_4 = arith.constant 0xFF800000 : f32
    %12 = vector.shape_cast %11 : vector<1x128xi1> to vector<1x128xi1>
    %13 = vector.broadcast %12 : vector<1x128xi1> to vector<8x128xi1>
    %14 = vector.broadcast %cst_4 : f32 to vector<8x128xf32>
    %15 = arith.select %13, %5, %14 : vector<8x128xi1>, vector<8x128xf32>
    %c0_5 = arith.constant 0 : index
    %c0_6 = arith.constant 0 : index
    %16 = vector.load %arg7[%c0_5, %c0_6] : memref<8x1xf32, #tpu.memory_space<vmem>>, vector<8x1xf32>
    %cst_7 = arith.constant dense<0xFF800000> : vector<8xf32>
    %17 = vector.multi_reduction <maximumf>, %15, %cst_7 [1] : vector<8x128xf32> to vector<8xf32>
    %18 = vector.shape_cast %17 : vector<8xf32> to vector<8x1xf32>
    %19 = arith.maximumf %16, %18 : vector<8x1xf32>
    %c0_8 = arith.constant 0 : index
    %c0_9 = arith.constant 0 : index
    %20 = vector.load %arg8[%c0_8, %c0_9] : memref<8x1xf32, #tpu.memory_space<vmem>>, vector<8x1xf32>
    %21 = arith.subf %16, %19 : vector<8x1xf32>
    %22 = math.exp %21 : vector<8x1xf32>
    %23 = arith.mulf %20, %22 : vector<8x1xf32>
    %24 = vector.broadcast %19 : vector<8x1xf32> to vector<8x128xf32>
    %25 = arith.subf %15, %24 : vector<8x128xf32>
    %26 = math.exp %25 : vector<8x128xf32>
    %cst_10 = arith.constant dense<0.000000e+00> : vector<8xf32>
    %27 = vector.multi_reduction <add>, %26, %cst_10 [1] : vector<8x128xf32> to vector<8xf32>
    %28 = vector.shape_cast %27 : vector<8xf32> to vector<8x1xf32>
    %29 = arith.addf %23, %28 : vector<8x1xf32>
    %c0_11 = arith.constant 0 : index
    %c0_12 = arith.constant 0 : index
    %30 = vector.load %arg8[%c0_11, %c0_12] : memref<8x1xf32, #tpu.memory_space<vmem>>, vector<8x1xf32>
    tpu.vector_store %arg8[%c0_11, %c0_12], %29 {strides = array<i32>} : memref<8x1xf32, #tpu.memory_space<vmem>>, vector<8x1xf32>,
    %c0_13 = arith.constant 0 : index
    %c0_14 = arith.constant 0 : index
    %31 = vector.load %arg7[%c0_13, %c0_14] : memref<8x1xf32, #tpu.memory_space<vmem>>, vector<8x1xf32>
    tpu.vector_store %arg7[%c0_13, %c0_14], %19 {strides = array<i32>} : memref<8x1xf32, #tpu.memory_space<vmem>>, vector<8x1xf32>,
    %c128_i32_15 = arith.constant 128 : i32
    %32 = arith.muli %arg1, %c128_i32_15 : i32
    %33 = tpu.assume_multiple %32, 128 : i32
    %c0_16 = arith.constant 0 : index
    %34 = arith.index_cast %33 : i32 to index
    %35 = vector.load %arg9[%c0_16, %34] : memref<8x512xf32, #tpu.memory_space<vmem>>, vector<8x128xf32>
    tpu.vector_store %arg9[%c0_16, %34], %15 {strides = array<i32>} : memref<8x512xf32, #tpu.memory_space<vmem>>, vector<8x128xf32>,
    %c3_i32 = arith.constant 3 : i32
    %36 = arith.cmpi eq, %arg1, %c3_i32 : i32
    %37 = arith.extui %36 : i1 to i32
    %c0_i32_17 = arith.constant 0 : i32
    %38 = arith.cmpi ne, %37, %c0_i32_17 : i32
    scf.if %38 {
      %c0_18 = arith.constant 0 : index
      %c0_19 = arith.constant 0 : index
      %39 = vector.load %arg9[%c0_18, %c0_19] : memref<8x512xf32, #tpu.memory_space<vmem>>, vector<8x512xf32>
      %c0_20 = arith.constant 0 : index
      %c0_21 = arith.constant 0 : index
      %40 = vector.load %arg7[%c0_20, %c0_21] : memref<8x1xf32, #tpu.memory_space<vmem>>, vector<8x1xf32>
      %41 = vector.broadcast %40 : vector<8x1xf32> to vector<8x512xf32>
      %42 = arith.subf %39, %41 : vector<8x512xf32>
      %43 = math.exp %42 : vector<8x512xf32>
      %c0_22 = arith.constant 0 : index
      %c0_23 = arith.constant 0 : index
      %44 = vector.load %arg8[%c0_22, %c0_23] : memref<8x1xf32, #tpu.memory_space<vmem>>, vector<8x1xf32>
      %45 = vector.broadcast %44 : vector<8x1xf32> to vector<8x512xf32>
      %46 = arith.divf %43, %45 : vector<8x512xf32>
      %c0_24 = arith.constant 0 : index
      %c0_25 = arith.constant 0 : index
      %47 = vector.load %arg5[%c0_24, %c0_25] : memref<8x512xf32, #tpu.memory_space<vmem>>, vector<8x512xf32>
      tpu.vector_store %arg5[%c0_24, %c0_25], %46 {strides = array<i32>} : memref<8x512xf32, #tpu.memory_space<vmem>>, vector<8x512xf32>,
    } else {
    }
    return
  }
  func.func @transform_0(%arg0: i32, %arg1: i32) -> (i32, i32) {
    %c0_i32 = arith.constant 0 : i32
    %c0_i32_0 = arith.constant 0 : i32
    return %arg0, %c0_i32 : i32, i32
  }
  func.func @transform_1(%arg0: i32, %arg1: i32) -> (i32, i32) {
    %c0_i32 = arith.constant 0 : i32
    %c0_i32_0 = arith.constant 0 : i32
    %c0_i32_1 = arith.constant 0 : i32
    return %c0_i32, %c0_i32_0 : i32, i32
  }
  func.func @transform_2(%arg0: i32, %arg1: i32) -> (i32, i32) {
    %c0_i32 = arith.constant 0 : i32
    %c0_i32_0 = arith.constant 0 : i32
    return %c0_i32, %arg1 : i32, i32
  }
  func.func @transform_3(%arg0: i32, %arg1: i32) -> (i32, i32) {
    %c0_i32 = arith.constant 0 : i32
    %c0_i32_0 = arith.constant 0 : i32
    return %arg0, %c0_i32 : i32, i32
  }
}

</mosaic_0001>

<llo_original>
// kernel: tpu_custom_call.1
$region0: #{tpu_custom_call.1}
  #allocation0 [shape = 'u32[]', space=smem, size = 0x4, offset = 0x4, fixed_abs, tag = 'smem constant byte address 0x4 - core index']
  #allocation1 [shape = 'u32[144,128]{1,0:T(1,128)}', space=vmem, size = 0x12000, scoped, tag = 'internal scratch']
  #allocation2 [shape = 'bf16[8,64]{1,0:T(8,128)(2,1)}', space=vmem, size = 0x800, scoped, tag = 'scratch operand']
  #allocation3 [shape = 'f32[8,1]{1,0:T(8,128)}', space=vmem, size = 0x1000, scoped, tag = 'scratch operand']
  #allocation4 [shape = 'f32[8,1]{1,0:T(8,128)}', space=vmem, size = 0x1000, scoped, tag = 'scratch operand']
  #allocation5 [shape = 'f32[8,512]{1,0:T(8,128)}', space=vmem, size = 0x4000, scoped, tag = 'scratch operand']
  %s0 = inlined_call_operand.hbm [shape: f32[16,64], index: 0, kind: input, shape index: {}]
  %s1 = inlined_call_operand.vmem [shape: f32[2,64], index: 1, kind: input, shape index: {}]
  %s2 = inlined_call_operand.hbm [shape: bf16[64,512], index: 2, kind: input, shape index: {}]
  %s3 = inlined_call_operand.hbm [shape: f32[16,512], index: 3, kind: output, shape index: {}]
  %s4 = sld [smem:[#allocation0]]
  $region61: #{tpu_custom_call.1} parent=0
    _
  %s6 = ssub.s32 1, %s4
  %s7 = scalar_select 0, %s6, %s4
  $region1: #{tpu_custom_call.1} parent=0
    #allocation6 [shape = 'u8[8192]{0}', space=vmem, size = 0x2000, scoped, tag = 'input window, operand 0']
    #allocation7 [shape = 's32[2]{0}', space=sflag, size = 0x8, scoped, tag = 'scoped memory for tpu_custom_call.1']
    #allocation8 [shape = 's32[2]{0}', space=sflag, size = 0x8, scoped, tag = 'scoped memory for tpu_custom_call.1']
    #allocation9 [shape = 'u8[32768]{0}', space=vmem, size = 0x8000, scoped, tag = 'input window, operand 2']
    #allocation10 [shape = 's32[2]{0}', space=sflag, size = 0x8, scoped, tag = 'scoped memory for tpu_custom_call.1']
    #allocation11 [shape = 'u8[32768]{0}', space=vmem, size = 0x8000, scoped, tag = 'output window, operand 0']
    %8 = vsyncpa [#allocation7], 0
    %s9 = scalar_lea.sflag [#allocation7], 1
    %10 = vsyncpa %s9, 0
    %11 = vsyncpa [#allocation10], 0
    %s12 = scalar_lea.sflag [#allocation10], 1
    %13 = vsyncpa %s12, 0
    %14 = vsyncpa [#allocation8], 0
    %s15 = scalar_lea.sflag [#allocation8], 1
    %16 = vsyncpa %s15, 0
    loop: start=0, step=1, limit=10
    $region2: #{tpu_custom_call.1} parent=1 // loop_pre_header
      _
    $region3: #{tpu_custom_call.1} parent=1 // loop_header
      %s18 = sphi 0, %s22
      %p19 = scmp.ge.s32.totalorder %s18, 10
      %s25 = sphi 0, %s37
      %s26 = sphi 0, %s33
      %s27 = sphi 0, %s25
      %s28 = sphi 0, %s26
      %s29 = sphi 0, %s27
      %s30 = sphi 0, %s28
      %s40 = sphi 0, %s42
      %s43 = sphi 0, %s40
      %s44 = sphi 0, %s43
      %s60 = sphi 0, %s44
      %s64 = sphi 0, %s64
      %s66 = sphi 0, %s64
      %s67 = sphi 0, %s66
      %s81 = sphi 0, %s67
      %s87 = sphi 0, %s89
      %s90 = sphi 0, %s87
      %s91 = sphi 0, %s90
      %s107 = sphi 0, %s91
      %s113 = sphi 0, %s115
      %s116 = sphi 0, %s113
      %s117 = sphi 0, %s116
      %s133 = sphi 0, %s117
    $region4: #{tpu_custom_call.1} parent=1 // loop_header_branch
      %21 = sbr.rel (%p19) target = $region8
    $region5: #{tpu_custom_call.1} parent=1 // loop_body
      %s23 = ssub.s32 %s18, 1
      %s24 = ssub.s32 %s18, 2
      %s31 = sadd.s32 1, %s26
      %p32 = scmp.ge.s32.totalorder %s31, 4
      %s33 = scalar_select %p32, 0, %s31
      %s34 = sadd.s32 1, %s25
      %s35 = scalar_select %p32, %s34, %s25
      %p36 = scmp.ge.s32.totalorder %s35, 2
      %s37 = scalar_select %p36, 0, %s35
      %s38 = ssub.s32 %s25, %s37
      %p39 = scmp.eq.s32.totalorder %s38, 0
      %s41 = sadd.s32 %s40, 1
      %s42 = scalar_select %p39, %s40, %s41
      %p45 = pneg %p39
      %p46 = scmp.eq.s32.totalorder %s18, 7
      %p47 = por %p45, %p46
      %p48 = scmp.ne.s32.totalorder %s40, %s43
      %p49 = scmp.eq.s32.totalorder %s18, 0
      %p50 = por %p48, %p49
      %p51 = scmp.ne.s32.totalorder %s40, %s43
      %p52 = scmp.eq.s32.totalorder %s23, 7
      %p53 = por %p51, %p52
      %p54 = scmp.ne.s32.totalorder %s43, %s44
      %p55 = scmp.eq.s32.totalorder %s23, 0
      %p56 = por %p54, %p55
      %p57 = scmp.ne.s32.totalorder %s43, %s44
      %p58 = scmp.eq.s32.totalorder %s24, 7
      %p59 = por %p57, %p58
      %p61 = scmp.ne.s32.totalorder %s44, %s60
      %p62 = scmp.eq.s32.totalorder %s24, 0
      %p63 = por %p61, %p62
      %s65 = sadd.s32 %s64, 1
      %p68 = scmp.eq.s32.totalorder %s18, 7
      %p69 = scmp.ne.s32.totalorder %s64, %s66
      %p70 = scmp.eq.s32.totalorder %s18, 0
      %p71 = por %p69, %p70
      %p72 = scmp.ne.s32.totalorder %s64, %s66
      %p73 = scmp.eq.s32.totalorder %s23, 7
      %p74 = por %p72, %p73
      %p75 = scmp.ne.s32.totalorder %s66, %s67
      %p76 = scmp.eq.s32.totalorder %s23, 0
      %p77 = por %p75, %p76
      %p78 = scmp.ne.s32.totalorder %s66, %s67
      %p79 = scmp.eq.s32.totalorder %s24, 7
      %p80 = por %p78, %p79
      %p82 = scmp.ne.s32.totalorder %s67, %s81
      %p83 = scmp.eq.s32.totalorder %s24, 0
      %p84 = por %p82, %p83
      %s85 = ssub.s32 %s26, %s33
      %p86 = scmp.eq.s32.totalorder %s85, 0
      %s88 = sadd.s32 %s87, 1
      %s89 = scalar_select %p86, %s87, %s88
      %p92 = pneg %p86
      %p93 = scmp.eq.s32.totalorder %s18, 7
      %p94 = por %p92, %p93
      %p95 = scmp.ne.s32.totalorder %s87, %s90
      %p96 = scmp.eq.s32.totalorder %s18, 0
      %p97 = por %p95, %p96
      %p98 = scmp.ne.s32.totalorder %s87, %s90
      %p99 = scmp.eq.s32.totalorder %s23, 7
      %p100 = por %p98, %p99
      %p101 = scmp.ne.s32.totalorder %s90, %s91
      %p102 = scmp.eq.s32.totalorder %s23, 0
      %p103 = por %p101, %p102
      %p104 = scmp.ne.s32.totalorder %s90, %s91
      %p105 = scmp.eq.s32.totalorder %s24, 7
      %p106 = por %p104, %p105
      %p108 = scmp.ne.s32.totalorder %s91, %s107
      %p109 = scmp.eq.s32.totalorder %s24, 0
      %p110 = por %p108, %p109
      %s111 = ssub.s32 %s25, %s37
      %p112 = scmp.eq.s32.totalorder %s111, 0
      %s114 = sadd.s32 %s113, 1
      %s115 = scalar_select %p112, %s113, %s114
      %p118 = pneg %p112
      %p119 = scmp.eq.s32.totalorder %s18, 7
      %p120 = por %p118, %p119
      %p121 = scmp.ne.s32.totalorder %s113, %s116
      %p122 = scmp.eq.s32.totalorder %s18, 0
      %p123 = por %p121, %p122
      %p124 = scmp.ne.s32.totalorder %s113, %s116
      %p125 = scmp.eq.s32.totalorder %s23, 7
      %p126 = por %p124, %p125
      %p127 = scmp.ne.s32.totalorder %s116, %s117
      %p128 = scmp.eq.s32.totalorder %s23, 0
      %p129 = por %p127, %p128
      %p130 = scmp.ne.s32.totalorder %s116, %s117
      %p131 = scmp.eq.s32.totalorder %s24, 7
      %p132 = por %p130, %p131
      %p134 = scmp.ne.s32.totalorder %s117, %s133
      %p135 = scmp.eq.s32.totalorder %s24, 0
      %p136 = por %p134, %p135
      %p137 = scmp.le.s32.totalorder 1, %s18
      %p138 = scmp.lt.s32.totalorder %s18, 9
      %p139 = pnand %p137, %p138
      %p140 = pneg %p139
      // Predicated region
      $region9: #{tpu_custom_call.1} parent=5 // pred_check
        _
      $region10: #{tpu_custom_call.1} parent=5 // pred_check_branch
        %142 = sbr.rel (%p139) target = $region12
      $region11: #{tpu_custom_call.1} parent=5 // pred_region
        %s143 = ssub.s32 %s18, 1
        // Predicated region
        $region13: #{tpu_custom_call.1} parent=11 // pred_check
          %p144 = pneg %p77
        $region14: #{tpu_custom_call.1} parent=11 // pred_check_branch
          %146 = sbr.rel (%p144) target = $region16
        $region15: #{tpu_custom_call.1} parent=11 // pred_region
          _
        $region16: #{tpu_custom_call.1} parent=11 // pred_fallthru
          _
      $region12: #{tpu_custom_call.1} parent=5 // pred_fallthru
        _
      %p147 = scmp.lt.s32.totalorder %s18, 8
      // Predicated region
      $region17: #{tpu_custom_call.1} parent=5 // pred_check
        %p148 = pneg %p147
      $region18: #{tpu_custom_call.1} parent=5 // pred_check_branch
        %150 = sbr.rel (%p148) target = $region20
      $region19: #{tpu_custom_call.1} parent=5 // pred_region
        // Predicated region
        $region21: #{tpu_custom_call.1} parent=19 // pred_check
          %p151 = pneg %p50
        $region22: #{tpu_custom_call.1} parent=19 // pred_check_branch
          %153 = sbr.rel (%p151) target = $region24
        $region23: #{tpu_custom_call.1} parent=19 // pred_region
          %s154 = sand.u32 %s40, 1
          %s155 = scalar_lea.sflag [#allocation7], %s154
          %s156 = sand.u32 %s40, 1
          %s157 = smul.addr %s156, 8
          %s158 = scalar_lea.vmem [#allocation6], %s157
          %s160 = ssub.s32 128, 128
          %161 = vsyncadd %s155, %s160
          %s162 = smul.addr %s25, 128
          %s163 = scalar_lea.hbm %s0, %s162
          %s165 = sshll.u32 %s158, 4
          %s166 = int_to_ptr.vmem [resolvable:$true] %s165
          %168 = dma.hbm_to_vmem [thread:$0]  %s163, 128, %s166, %s155
        $region24: #{tpu_custom_call.1} parent=19 // pred_fallthru
          _
        // Predicated region
        $region25: #{tpu_custom_call.1} parent=19 // pred_check
          %p169 = pneg %p97
        $region26: #{tpu_custom_call.1} parent=19 // pred_check_branch
          %171 = sbr.rel (%p169) target = $region28
        $region27: #{tpu_custom_call.1} parent=19 // pred_region
          %s172 = sand.u32 %s87, 1
          %s173 = scalar_lea.sflag [#allocation10], %s172
          %s174 = sand.u32 %s87, 1
          %s175 = smul.addr %s174, 32
          %s176 = scalar_lea.vmem [#allocation9], %s175
          %s178 = ssub.s32 512, 512
          %179 = vsyncadd %s173, %s178
          %s180 = smul.addr %s26, 64
          %s181 = scalar_lea.hbm %s2, %s180
          %s182 = sshll.u32 %s176, 4
          %s183 = int_to_ptr.vmem [resolvable:$true] %s182
          %188 = dma.hbm_to_vmem [thread:$0]  %s181, 512, %s183, %s173, 256, 64, 4
        $region28: #{tpu_custom_call.1} parent=19 // pred_fallthru
          _
      $region20: #{tpu_custom_call.1} parent=5 // pred_fallthru
        _
      %p189 = scmp.le.s32.totalorder 1, %s18
      %p190 = scmp.lt.s32.totalorder %s18, 9
      %p191 = pnand %p189, %p190
      %p192 = pneg %p191
      // Predicated region
      $region29: #{tpu_custom_call.1} parent=5 // pred_check
        _
      $region30: #{tpu_custom_call.1} parent=5 // pred_check_branch
        %194 = sbr.rel (%p191) target = $region32
      $region31: #{tpu_custom_call.1} parent=5 // pred_region
        %s195 = ssub.s32 %s18, 1
        %s196 = sand.u32 %s43, 1
        %s197 = scalar_lea.sflag [#allocation7], %s196
        %s198 = sand.u32 %s43, 1
        %s199 = smul.addr %s198, 8
        %s200 = scalar_lea.vmem [#allocation6], %s199
        // Predicated region
        $region33: #{tpu_custom_call.1} parent=31 // pred_check
          %p201 = pneg %p56
        $region34: #{tpu_custom_call.1} parent=31 // pred_check_branch
          %203 = sbr.rel (%p201) target = $region36
        $region35: #{tpu_custom_call.1} parent=31 // pred_region
          %204 = dma.done %s197, 128
        $region36: #{tpu_custom_call.1} parent=31 // pred_fallthru
          _
        %s205 = sand.u32 %s90, 1
        %s206 = scalar_lea.sflag [#allocation10], %s205
        %s207 = sand.u32 %s90, 1
        %s208 = smul.addr %s207, 32
        %s209 = scalar_lea.vmem [#allocation9], %s208
        // Predicated region
        $region37: #{tpu_custom_call.1} parent=31 // pred_check
          %p210 = pneg %p103
        $region38: #{tpu_custom_call.1} parent=31 // pred_check_branch
          %212 = sbr.rel (%p210) target = $region40
        $region39: #{tpu_custom_call.1} parent=31 // pred_region
          %213 = dma.done %s206, 512
        $region40: #{tpu_custom_call.1} parent=31 // pred_fallthru
          _
        %s214 = sand.u32 %s43, 1
        %s215 = scalar_lea.sflag [#allocation7], %s214
        %s216 = sand.u32 %s43, 1
        %s217 = smul.addr %s216, 8
        %s218 = scalar_lea.vmem [#allocation6], %s217
        %p219 = pneg %p56
        %p220 = pneg %p53
        %p221 = pneg %p77
        %p222 = pneg %p74
        %s223 = sand.u32 %s90, 1
        %s224 = scalar_lea.sflag [#allocation10], %s223
        %s225 = sand.u32 %s90, 1
        %s226 = smul.addr %s225, 32
        %s227 = scalar_lea.vmem [#allocation9], %s226
        %p228 = pneg %p103
        %p229 = pneg %p100
        %p230 = pneg %p129
        %p231 = pneg %p126
        %s232 = sand.u32 %s116, 1
        %s233 = scalar_lea.sflag [#allocation8], %s232
        %s234 = sand.u32 %s116, 1
        %s235 = smul.addr %s234, 32
        %s236 = scalar_lea.vmem [#allocation11], %s235
        %p238 = scmp.eq.s32.totalorder %s28, 0
        // Predicated region
        $region41: #{tpu_custom_call.1} parent=31 // pred_check
          %p239 = pneg %p238
        $region42: #{tpu_custom_call.1} parent=31 // pred_check_branch
          %241 = sbr.rel (%p239) target = $region44
        $region43: #{tpu_custom_call.1} parent=31 // pred_region
          %v242 = vld [vmem:[%s200] sm:$0xff]
          %vm243 = vcmask 523264
          %v244 = vsel %vm243, %v242, 0.0
          %245 = vadd.xlane.f32.xlu0 %v244
          %v246 = vpop.xlane.xlu0 %245
          %v247 = vrcp.pop 64.0
          %v248 = vmul.f32 %v246, %v247
          %v249 = vsub.f32 %v242, %v248
          %v250 = vmul.f32 %v249, %v249
          %v251 = vsel %vm243, %v250, 0.0
          %252 = vadd.xlane.f32.xlu0 %v251
          %v253 = vpop.xlane.xlu0 %252
          %v254 = vmul.f32 %v253, %v247
          %v255 = vld [vmem:[%s1] sm:$0x1]
          %v256 = vld [vmem:[%s1 + $0x1] sm:$0x1]
          %v257 = vadd.f32 %v254, 1e-05
          %v258 = vrsqrt.pop %v257
          %v259 = vmul.f32 %v249, %v258
          %v260 = vlaneseq
          %v261 = vshrl.u32 %v260, 7
          %v262 = vsub.s32 0, %v261
          %v263 = vrot.slane %v255, %v262
          %v264 = vmul.f32 %v259, %v263
          %v265 = vlaneseq
          %v266 = vshrl.u32 %v265, 7
          %v267 = vsub.s32 0, %v266
          %v268 = vrot.slane %v256, %v267
          %v269 = vadd.f32 %v264, %v268
          %v270 = vpack.c.bf16 %v269, %v269
          %vm271 = vcmask 519168
          %272 = vst.msk [vmem:[#allocation2] sm:$0xf] %vm271, %v270
          %vm273 = vcmask 7168
          %274 = vst.msk [vmem:[#allocation3] sm:$0xff] %vm273, -inf
          %275 = vst.msk [vmem:[#allocation4] sm:$0xff] %vm273, 0.0
        $region44: #{tpu_custom_call.1} parent=31 // pred_fallthru
          _
        %v276 = vld [vmem:[#allocation2] sm:$0xf]
        %v277 = vld [vmem:[%s209] sm:$0xf]
        %v278 = vld [vmem:[%s209 + $0x4] sm:$0xf]
        %v279 = vld [vmem:[%s209 + $0x8] sm:$0xf]
        %v280 = vld [vmem:[%s209 + $0xc] sm:$0xf]
        %v281 = vld [vmem:[%s209 + $0x10] sm:$0xf]
        %v282 = vld [vmem:[%s209 + $0x14] sm:$0xf]
        %v283 = vld [vmem:[%s209 + $0x18] sm:$0xf]
        %v284 = vld [vmem:[%s209 + $0x1c] sm:$0xf]
        %v293 = vunpack.c.l.b16 %v277
        %v294 = vunpack.c.l.b16 %v278
        %v295 = vunpack.c.l.b16 %v279
        %v296 = vunpack.c.l.b16 %v280
        %v297 = vunpack.c.l.b16 %v281
        %v298 = vunpack.c.l.b16 %v282
        %v299 = vunpack.c.l.b16 %v283
        %v300 = vunpack.c.l.b16 %v284
        %v301 = vpack.c.b16 %v294, %v293
        %v302 = vpack.c.b16 %v296, %v295
        %v303 = vpack.c.b16 %v298, %v297
        %v304 = vpack.c.b16 %v300, %v299
        %vm309 = vcmask 523264
        %v311 = vsel %vm309, %v276, 0
        %313 = vmatprep.subr.bf16.mxu0 0
        %314 = vmatpush1.bf16.msra.mxu0 %v301
        %315 = vmatprep.subr.bf16.mxu0 0
        %316 = vmatpush1.bf16.msra.mxu0 %v302
        %317 = vmatprep.subr.bf16.mxu0 0
        %318 = vmatpush1.bf16.msra.mxu0 %v303
        %319 = vmatprep.subr.bf16.mxu0 0
        %320 = vmatpush1.bf16.msra.mxu0 %v304
        %321 = vmatprep.subr.bf16.mxu0 0
        %322 = vmatpush1.bf16.msra.mxu0 0
        %323 = vmatprep.subr.bf16.mxu0 0
        %324 = vmatpush1.bf16.msra.mxu0 0
        %325 = vmatprep.subr.bf16.mxu0 0
        %326 = vmatpush1.bf16.msra.mxu0 0
        %327 = vmatprep.subr.bf16.mxu0 0
        %328 = vmatpush1.bf16.msra.mxu0 0
        %329 = vmatprep.subr.bf16.mxu0 0
        %330 = vmatpush1.bf16.msra.mxu0 0
        %331 = vmatprep.subr.bf16.mxu0 0
        %332 = vmatpush1.bf16.msra.mxu0 0
        %333 = vmatprep.subr.bf16.mxu0 0
        %334 = vmatpush1.bf16.msra.mxu0 0
        %335 = vmatprep.subr.bf16.mxu0 0
        %336 = vmatpush1.bf16.msra.mxu0 0
        %337 = vmatprep.subr.bf16.mxu0 0
        %338 = vmatpush1.bf16.msra.mxu0 0
        %339 = vmatprep.subr.bf16.mxu0 0
        %340 = vmatpush1.bf16.msra.mxu0 0
        %341 = vmatprep.subr.bf16.mxu0 0
        %342 = vmatpush1.bf16.msra.mxu0 0
        %343 = vmatprep.subr.bf16.mxu0 0
        %344 = vmatpush1.bf16.msra.mxu0 0
        %345 = vmatprep.mubr.bf16.mxu0 0
        %346 = vmatmul.mubr.bf16.gmra.mrb[0].mxu0 %v311
        %v347 = vpop.f32.mrb[0].mxu0
        %v348 = vadd.f32 0.0, %v347
        %v349 = vpop.f32.mrb[0].mxu0
        %v350 = vpop.f32.mrb[0].mxu0
        %v351 = vpop.f32.mrb[0].mxu0
        %352 = vdwg.mxu0
        %s353 = smul.u32 %s28, 128
        %v354 = vlaneseq
        %v355 = vand.u32 %v354, 127
        %v356 = vstv %s353
        %v357 = vadd.s32 %v356, %v355
        %vm358 = vcmp.lt.s32.totalorder %v357, 500
        %v359 = vsel %vm358, 1, 0
        %vm360 = vcmp.eq.s32.totalorder %v359, 1
        %v361 = vsel %vm360, %v348, -inf
        %v362 = vld [vmem:[#allocation3] sm:$0xff]
        %363 = vmax.xlane.f32.xlu0 %v361
        %v364 = vpop.xlane.xlu0 %363
        %v365 = vmax.f32 %v362, %v364
        %v366 = vld [vmem:[#allocation4] sm:$0xff]
        %v367 = vsub.f32 %v362, %v365
        %v368 = vmul.f32 %v367, 1.442695
        %v369 = vpow.pop %v368
        %v370 = vmul.f32 %v366, %v369
        %372 = vset.pattern.permute.xlu0 0
        %373 = vperm.xlu0 %372, %v365
        %v374 = vpop.permute.xlu0 %373
        %v376 = vsub.f32 %v361, %v374
        %v377 = vmul.f32 %v376, 1.442695
        %v378 = vpow.pop %v377
        %379 = vadd.xlane.f32.xlu0 %v378
        %v380 = vpop.xlane.xlu0 %379
        %v381 = vadd.f32 %v370, %v380
        %vm382 = vcmask 7168
        %383 = vst.msk [vmem:[#allocation4] sm:$0xff] %vm382, %v381
        %384 = vst.msk [vmem:[#allocation3] sm:$0xff] %vm382, %v365
        %s385 = sshra.s32 %s353, 7
        %s386 = sand.u32 %s353, 127
        %s387 = smul.addr %s385, 8
        %s388 = scalar_lea.vmem [#allocation5], %s387
        %389 = vst [vmem:[%s388] sm:$0xff] %v361
        %p390 = scmp.eq.s32.totalorder %s28, 3
        // Predicated region
        $region45: #{tpu_custom_call.1} parent=31 // pred_check
          %p391 = pneg %p390
        $region46: #{tpu_custom_call.1} parent=31 // pred_check_branch
          %393 = sbr.rel (%p391) target = $region48
        $region47: #{tpu_custom_call.1} parent=31 // pred_region
          %v394 = vld [vmem:[#allocation5] sm:$0xff]
          %v395 = vld [vmem:[#allocation5 + $0x8] sm:$0xff]
          %v396 = vld [vmem:[#allocation5 + $0x10] sm:$0xff]
          %v397 = vld [vmem:[#allocation5 + $0x18] sm:$0xff]
          %v398 = vld [vmem:[#allocation3] sm:$0xff]
          %400 = vset.pattern.permute.xlu0 0
          %401 = vperm.xlu0 %400, %v398
          %v402 = vpop.permute.xlu0 %401
          %v404 = vsub.f32 %v394, %v402
          %v405 = vsub.f32 %v395, %v402
          %v406 = vsub.f32 %v396, %v402
          %v407 = vsub.f32 %v397, %v402
          %v408 = vmul.f32 %v404, 1.442695
          %v409 = vpow.pop %v408
          %v410 = vmul.f32 %v405, 1.442695
          %v411 = vpow.pop %v410
          %v412 = vmul.f32 %v406, 1.442695
          %v413 = vpow.pop %v412
          %v414 = vmul.f32 %v407, 1.442695
          %v415 = vpow.pop %v414
          %v416 = vld [vmem:[#allocation4] sm:$0xff]
          %418 = vset.pattern.permute.xlu0 0
          %419 = vperm.xlu0 %418, %v416
          %v420 = vpop.permute.xlu0 %419
          %v422 = vrcp.pop %v420
          %v423 = vmul.f32 %v409, %v422
          %v424 = vmul.f32 %v411, %v422
          %v425 = vmul.f32 %v413, %v422
          %v426 = vmul.f32 %v415, %v422
          %427 = vst [vmem:[%s236] sm:$0xff] %v423
          %428 = vst [vmem:[%s236 + $0x8] sm:$0xff] %v424
          %429 = vst [vmem:[%s236 + $0x10] sm:$0xff] %v425
          %430 = vst [vmem:[%s236 + $0x18] sm:$0xff] %v426
        $region48: #{tpu_custom_call.1} parent=31 // pred_fallthru
          _
        %s431 = sand.u32 %s116, 1
        %s432 = scalar_lea.sflag [#allocation8], %s431
        %s433 = sand.u32 %s116, 1
        %s434 = smul.addr %s433, 32
        %s435 = scalar_lea.vmem [#allocation11], %s434
        // Predicated region
        $region49: #{tpu_custom_call.1} parent=31 // pred_check
          %p436 = pneg %p126
        $region50: #{tpu_custom_call.1} parent=31 // pred_check_branch
          %438 = sbr.rel (%p436) target = $region52
        $region51: #{tpu_custom_call.1} parent=31 // pred_region
          %s440 = ssub.s32 512, 512
          %441 = vsyncadd %s432, %s440
          %s442 = smul.addr %s27, 4
          %s443 = smul.addr %s442, 128
          %s444 = scalar_lea.hbm %s3, %s443
          %s446 = sshll.u32 %s435, 4
          %s447 = int_to_ptr.vmem [resolvable:$true] %s446
          %449 = dma.vmem_to_hbm [thread:$0]  %s447, 512, %s444, %s432
        $region52: #{tpu_custom_call.1} parent=31 // pred_fallthru
          _
      $region32: #{tpu_custom_call.1} parent=5 // pred_fallthru
        _
      %p450 = scmp.le.s32.totalorder 2, %s18
      // Predicated region
      $region53: #{tpu_custom_call.1} parent=5 // pred_check
        %p451 = pneg %p450
      $region54: #{tpu_custom_call.1} parent=5 // pred_check_branch
        %453 = sbr.rel (%p451) target = $region56
      $region55: #{tpu_custom_call.1} parent=5 // pred_region
        %s454 = ssub.s32 %s18, 2
        // Predicated region
        $region57: #{tpu_custom_call.1} parent=55 // pred_check
          %p455 = pneg %p132
        $region58: #{tpu_custom_call.1} parent=55 // pred_check_branch
          %457 = sbr.rel (%p455) target = $region60
        $region59: #{tpu_custom_call.1} parent=55 // pred_region
          %s458 = sand.u32 %s117, 1
          %s459 = scalar_lea.sflag [#allocation8], %s458
          %s460 = sand.u32 %s117, 1
          %s461 = smul.addr %s460, 32
          %s462 = scalar_lea.vmem [#allocation11], %s461
          %463 = dma.done %s459, 512
        $region60: #{tpu_custom_call.1} parent=55 // pred_fallthru
          _
      $region56: #{tpu_custom_call.1} parent=5 // pred_fallthru
        _
    $region6: #{tpu_custom_call.1} parent=1 // loop_footer
      %s22 = sadd.s32 1, %s18
    $region7: #{tpu_custom_call.1} parent=1 // loop_footer_branch
      %17 = sbr.rel target = $region3
    $region8: #{tpu_custom_call.1} parent=1 // loop_exit
      _
    %464 = vsyncpa [#allocation7], 1
    %s465 = scalar_lea.sflag [#allocation7], 1
    %466 = vsyncpa %s465, 1
    %467 = vsyncpa [#allocation10], 1
    %s468 = scalar_lea.sflag [#allocation10], 1
    %469 = vsyncpa %s468, 1
    %470 = vsyncpa [#allocation8], 1
    %s471 = scalar_lea.sflag [#allocation8], 1
    %472 = vsyncpa %s471, 1

</llo_original>
